<compile_context>
chip_gen: v5e
topology: v5e:2x2
jax: 0.10.0
libtpu: 0.0.40
codegen_flags: <defaults>
</compile_context>

<pallas_src>
import jax
import jax.numpy as jnp
from jax.experimental import pallas as pl
from jax.experimental.pallas import tpu as pltpu


def _fused_linear_kernel(xsT_ref, xlT_ref, ws_ref, bs_ref, wl_ref, bl_ref,
                         ysT_ref, ylT_ref):
    """Fused  y_seq = x_seq @ W_seq^T + b_seq  and  y_l = x_l @ W_l^T + b_l.

    Lane-dense layout: batch lives on the 128-lane axis, features on sublanes.
    Weights/biases are scalars in SMEM -> pure VPU FMAs, no MXU, no transpose.
    """
    xs0 = xsT_ref[0:1, :]          # (1, bn)  x_seq feature 0 over the batch
    xs1 = xsT_ref[1:2, :]          # (1, bn)  x_seq feature 1 over the batch
    xl0 = xlT_ref[0:1, :]          # (1, bn)  x_l   feature 0 over the batch

    # nn.Linear(2, 2):  y^T[o, :] = W[o,0]*x0 + W[o,1]*x1 + b[o]
    ysT_ref[0:1, :] = ws_ref[0, 0] * xs0 + ws_ref[0, 1] * xs1 + bs_ref[0]
    ysT_ref[1:2, :] = ws_ref[1, 0] * xs0 + ws_ref[1, 1] * xs1 + bs_ref[1]

    # nn.Linear(1, 2):  y^T[o, :] = W[o,0]*x0 + b[o]
    ylT_ref[0:1, :] = wl_ref[0, 0] * xl0 + bl_ref[0]
    ylT_ref[1:2, :] = wl_ref[1, 0] * xl0 + bl_ref[1]


def fused_linears(x_seq, x_l, w_seq, b_seq, w_l, b_l, *, block_b=512):
    """Run both nn.Linear layers of ResBlock_3 in one Pallas call.

    x_seq: (B, 2), x_l: (B, 1)  ->  (y_seq (B, 2), y_l (B, 2))
    Weights are PyTorch-layout (out_features, in_features); biases (out,).
    """
    assert x_seq.shape[0] == x_l.shape[0], "batch sizes must match"
    B = x_seq.shape[0]
    LANE = 128

    # Lane block: at least 128 (lane-dense), up to `block_b` rows per block
    # when the batch is large (bigger blocks -> better pipelining at scale).
    bn = block_b if B >= block_b else LANE * pl.cdiv(max(B, 1), LANE)
    b_pad = bn * pl.cdiv(B, bn)

    # Layout plumbing in the wrapper (not in-kernel): batch onto the lane
    # axis, zero-pad up to a multiple of the lane block.
    xsT = jnp.pad(x_seq.T, ((0, 0), (0, b_pad - B)))   # (2, b_pad)
    xlT = jnp.pad(x_l.T, ((0, 0), (0, b_pad - B)))     # (1, b_pad)

    ysT, ylT = pl.pallas_call(
        _fused_linear_kernel,
        out_shape=(jax.ShapeDtypeStruct((2, b_pad), jnp.float32),
                   jax.ShapeDtypeStruct((2, b_pad), jnp.float32)),
        grid=(b_pad // bn,),
        in_specs=[
            pl.BlockSpec((2, bn), lambda j: (0, j)),                 # x_seq^T
            pl.BlockSpec((1, bn), lambda j: (0, j)),                 # x_l^T
            pl.BlockSpec(memory_space=pltpu.MemorySpace.SMEM),       # W_seq
            pl.BlockSpec(memory_space=pltpu.MemorySpace.SMEM),       # b_seq
            pl.BlockSpec(memory_space=pltpu.MemorySpace.SMEM),       # W_l
            pl.BlockSpec(memory_space=pltpu.MemorySpace.SMEM),       # b_l
        ],
        out_specs=(pl.BlockSpec((2, bn), lambda j: (0, j)),
                   pl.BlockSpec((2, bn), lambda j: (0, j))),
        compiler_params=pltpu.CompilerParams(
            dimension_semantics=("parallel",)),
    )(xsT, xlT, w_seq, b_seq, w_l, b_l)

    # Back to PyTorch's (B, out) layout, dropping the pad rows.
    return ysT[:, :B].T, ylT[:, :B].T


class ResBlock3:
    """JAX/Pallas mirror of the PyTorch ResBlock_3 module."""

    def __init__(self, key):
        k1, k2, k3, k4 = jax.random.split(key, 4)
        # self.seq = nn.Sequential(nn.Linear(2, 2))
        bound_seq = 1.0 / jnp.sqrt(2.0)
        self.seq_w = jax.random.uniform(k1, (2, 2), jnp.float32, -bound_seq, bound_seq)
        self.seq_b = jax.random.uniform(k2, (2,), jnp.float32, -bound_seq, bound_seq)
        # self.l = nn.Linear(1, 2)
        bound_l = 1.0
        self.l_w = jax.random.uniform(k3, (2, 1), jnp.float32, -bound_l, bound_l)
        self.l_b = jax.random.uniform(k4, (2,), jnp.float32, -bound_l, bound_l)

    def forward(self):
        # Faithful to the PyTorch module: forward() body is `pass` -> None.
        # TODO(synk): original forward has an empty body; no computation is defined there.
        return None

    def apply_layers(self, x_seq, x_l):
        """The module's only compute (its two Linear sub-layers), fused."""
        return fused_linears(x_seq, x_l, self.seq_w, self.seq_b, self.l_w, self.l_b)


if __name__ == "__main__":
    key = jax.random.PRNGKey(0)
    kp, kx1, kx2 = jax.random.split(key, 3)

    block = ResBlock3(kp)

    # forward() itself is a no-op, exactly like the PyTorch module.
    assert block.forward() is None

    # Small deterministic inputs; batch = 128 so it sits exactly on the lane axis.
    B = 128
    x_seq = jax.random.normal(kx1, (B, 2), jnp.float32)
    x_l = jax.random.normal(kx2, (B, 1), jnp.float32)

    y_seq, y_l = block.apply_layers(x_seq, x_l)
    jax.block_until_ready((y_seq, y_l))

    # Verify against plain-JAX reference (nn.Linear: x @ W^T + b).
    ref_seq = x_seq @ block.seq_w.T + block.seq_b
    ref_l = x_l @ block.l_w.T + block.l_b
    assert jnp.allclose(y_seq, ref_seq, atol=1e-5), "seq Linear mismatch"
    assert jnp.allclose(y_l, ref_l, atol=1e-5), "l Linear mismatch"

    print("KERNEL_OK")
</pallas_src>

<mosaic_0001>
module attributes {stable_mosaic.version = 11 : i64} {
  func.func @_fused_linear_kernel(%arg0: i32, %arg1: memref<2x128xf32, #tpu.memory_space<vmem>>, %arg2: memref<1x128xf32, #tpu.memory_space<vmem>>, %arg3: memref<2x2xf32, #tpu.memory_space<smem>>, %arg4: memref<2xf32, #tpu.memory_space<smem>>, %arg5: memref<2x1xf32, #tpu.memory_space<smem>>, %arg6: memref<2xf32, #tpu.memory_space<smem>>, %arg7: memref<2x128xf32, #tpu.memory_space<vmem>>, %arg8: memref<2x128xf32, #tpu.memory_space<vmem>>) attributes {dimension_semantics = [#tpu.dimension_semantics<parallel>], iteration_bounds = array<i64: 1>, scalar_prefetch = 0 : i64, scratch_operands = 0 : i64, tpu.core_type = #tpu.core_type<tc>, window_params = [{transform_indices = @transform_0, window_bounds = array<i64: 2, 128>}, {transform_indices = @transform_1, window_bounds = array<i64: 1, 128>}, {transform_indices = @transform_2, window_bounds = array<i64: 2, 2>}, {transform_indices = @transform_3, window_bounds = array<i64: 2>}, {transform_indices = @transform_4, window_bounds = array<i64: 2, 1>}, {transform_indices = @transform_5, window_bounds = array<i64: 2>}, {transform_indices = @transform_6, window_bounds = array<i64: 2, 128>}, {transform_indices = @transform_7, window_bounds = array<i64: 2, 128>}]} {
    %c0 = arith.constant 0 : index
    %c0_0 = arith.constant 0 : index
    %0 = vector.load %arg1[%c0, %c0_0] : memref<2x128xf32, #tpu.memory_space<vmem>>, vector<1x128xf32>
    %c1 = arith.constant 1 : index
    %c0_1 = arith.constant 0 : index
    %1 = vector.load %arg1[%c1, %c0_1] : memref<2x128xf32, #tpu.memory_space<vmem>>, vector<1x128xf32>
    %c0_2 = arith.constant 0 : index
    %c0_3 = arith.constant 0 : index
    %2 = vector.load %arg2[%c0_2, %c0_3] : memref<1x128xf32, #tpu.memory_space<vmem>>, vector<1x128xf32>
    %c0_4 = arith.constant 0 : index
    %c0_5 = arith.constant 0 : index
    %3 = memref.load %arg3[%c0_4, %c0_5] : memref<2x2xf32, #tpu.memory_space<smem>>
    %4 = vector.broadcast %3 : f32 to vector<1x128xf32>
    %5 = arith.mulf %4, %0 : vector<1x128xf32>
    %c0_6 = arith.constant 0 : index
    %c1_7 = arith.constant 1 : index
    %6 = memref.load %arg3[%c0_6, %c1_7] : memref<2x2xf32, #tpu.memory_space<smem>>
    %7 = vector.broadcast %6 : f32 to vector<1x128xf32>
    %8 = arith.mulf %7, %1 : vector<1x128xf32>
    %9 = arith.addf %5, %8 : vector<1x128xf32>
    %c0_8 = arith.constant 0 : index
    %10 = memref.load %arg4[%c0_8] : memref<2xf32, #tpu.memory_space<smem>>
    %11 = vector.broadcast %10 : f32 to vector<1x128xf32>
    %12 = arith.addf %9, %11 : vector<1x128xf32>
    %c0_9 = arith.constant 0 : index
    %c0_10 = arith.constant 0 : index
    %13 = vector.load %arg7[%c0_9, %c0_10] : memref<2x128xf32, #tpu.memory_space<vmem>>, vector<1x128xf32>
    tpu.vector_store %arg7[%c0_9, %c0_10], %12 {strides = array<i32>} : memref<2x128xf32, #tpu.memory_space<vmem>>, vector<1x128xf32>,
    %c1_11 = arith.constant 1 : index
    %c0_12 = arith.constant 0 : index
    %14 = memref.load %arg3[%c1_11, %c0_12] : memref<2x2xf32, #tpu.memory_space<smem>>
    %15 = vector.broadcast %14 : f32 to vector<1x128xf32>
    %16 = arith.mulf %15, %0 : vector<1x128xf32>
    %c1_13 = arith.constant 1 : index
    %c1_14 = arith.constant 1 : index
    %17 = memref.load %arg3[%c1_13, %c1_14] : memref<2x2xf32, #tpu.memory_space<smem>>
    %18 = vector.broadcast %17 : f32 to vector<1x128xf32>
    %19 = arith.mulf %18, %1 : vector<1x128xf32>
    %20 = arith.addf %16, %19 : vector<1x128xf32>
    %c1_15 = arith.constant 1 : index
    %21 = memref.load %arg4[%c1_15] : memref<2xf32, #tpu.memory_space<smem>>
    %22 = vector.broadcast %21 : f32 to vector<1x128xf32>
    %23 = arith.addf %20, %22 : vector<1x128xf32>
    %c1_16 = arith.constant 1 : index
    %c0_17 = arith.constant 0 : index
    %24 = vector.load %arg7[%c1_16, %c0_17] : memref<2x128xf32, #tpu.memory_space<vmem>>, vector<1x128xf32>
    tpu.vector_store %arg7[%c1_16, %c0_17], %23 {strides = array<i32>} : memref<2x128xf32, #tpu.memory_space<vmem>>, vector<1x128xf32>,
    %c0_18 = arith.constant 0 : index
    %c0_19 = arith.constant 0 : index
    %25 = memref.load %arg5[%c0_18, %c0_19] : memref<2x1xf32, #tpu.memory_space<smem>>
    %26 = vector.broadcast %25 : f32 to vector<1x128xf32>
    %27 = arith.mulf %26, %2 : vector<1x128xf32>
    %c0_20 = arith.constant 0 : index
    %28 = memref.load %arg6[%c0_20] : memref<2xf32, #tpu.memory_space<smem>>
    %29 = vector.broadcast %28 : f32 to vector<1x128xf32>
    %30 = arith.addf %27, %29 : vector<1x128xf32>
    %c0_21 = arith.constant 0 : index
    %c0_22 = arith.constant 0 : index
    %31 = vector.load %arg8[%c0_21, %c0_22] : memref<2x128xf32, #tpu.memory_space<vmem>>, vector<1x128xf32>
    tpu.vector_store %arg8[%c0_21, %c0_22], %30 {strides = array<i32>} : memref<2x128xf32, #tpu.memory_space<vmem>>, vector<1x128xf32>,
    %c1_23 = arith.constant 1 : index
    %c0_24 = arith.constant 0 : index
    %32 = memref.load %arg5[%c1_23, %c0_24] : memref<2x1xf32, #tpu.memory_space<smem>>
    %33 = vector.broadcast %32 : f32 to vector<1x128xf32>
    %34 = arith.mulf %33, %2 : vector<1x128xf32>
    %c1_25 = arith.constant 1 : index
    %35 = memref.load %arg6[%c1_25] : memref<2xf32, #tpu.memory_space<smem>>
    %36 = vector.broadcast %35 : f32 to vector<1x128xf32>
    %37 = arith.addf %34, %36 : vector<1x128xf32>
    %c1_26 = arith.constant 1 : index
    %c0_27 = arith.constant 0 : index
    %38 = vector.load %arg8[%c1_26, %c0_27] : memref<2x128xf32, #tpu.memory_space<vmem>>, vector<1x128xf32>
    tpu.vector_store %arg8[%c1_26, %c0_27], %37 {strides = array<i32>} : memref<2x128xf32, #tpu.memory_space<vmem>>, vector<1x128xf32>,
    return
  }
  func.func @transform_0(%arg0: i32) -> (i32, i32) {
    %c0_i32 = arith.constant 0 : i32
    %c0_i32_0 = arith.constant 0 : i32
    return %c0_i32, %arg0 : i32, i32
  }
  func.func @transform_1(%arg0: i32) -> (i32, i32) {
    %c0_i32 = arith.constant 0 : i32
    %c0_i32_0 = arith.constant 0 : i32
    return %c0_i32, %arg0 : i32, i32
  }
  func.func @transform_2(%arg0: i32) -> (i32, i32) {
    %c0_i32 = arith.constant 0 : i32
    %c0_i32_0 = arith.constant 0 : i32
    %c0_i32_1 = arith.constant 0 : i32
    return %c0_i32, %c0_i32_0 : i32, i32
  }
  func.func @transform_3(%arg0: i32) -> i32 {
    %c0_i32 = arith.constant 0 : i32
    %c0_i32_0 = arith.constant 0 : i32
    return %c0_i32 : i32
  }
  func.func @transform_4(%arg0: i32) -> (i32, i32) {
    %c0_i32 = arith.constant 0 : i32
    %c0_i32_0 = arith.constant 0 : i32
    %c0_i32_1 = arith.constant 0 : i32
    return %c0_i32, %c0_i32_0 : i32, i32
  }
  func.func @transform_5(%arg0: i32) -> i32 {
    %c0_i32 = arith.constant 0 : i32
    %c0_i32_0 = arith.constant 0 : i32
    return %c0_i32 : i32
  }
  func.func @transform_6(%arg0: i32) -> (i32, i32) {
    %c0_i32 = arith.constant 0 : i32
    %c0_i32_0 = arith.constant 0 : i32
    return %c0_i32, %arg0 : i32, i32
  }
  func.func @transform_7(%arg0: i32) -> (i32, i32) {
    %c0_i32 = arith.constant 0 : i32
    %c0_i32_0 = arith.constant 0 : i32
    return %c0_i32, %arg0 : i32, i32
  }
}

</mosaic_0001>

<llo_original>
// kernel: tpu_custom_call.1
$region0: #{tpu_custom_call.1}
  #allocation0 [shape = 'u32[]', space=smem, size = 0x4, offset = 0x4, fixed_abs, tag = 'smem constant byte address 0x4 - core index']
  #allocation1 [shape = 'u32[72,128]{1,0:T(1,128)}', space=vmem, size = 0x9000, scoped, tag = 'internal scratch']
  %s0 = inlined_call_operand.vmem [shape: f32[2,128], index: 0, kind: input, shape index: {}]
  %s1 = inlined_call_operand.vmem [shape: f32[1,128], index: 1, kind: input, shape index: {}]
  %s2 = inlined_call_operand.hbm [shape: f32[2,2], index: 2, kind: input, shape index: {}]
  %s3 = inlined_call_operand.vmem [shape: f32[2], index: 3, kind: input, shape index: {}]
  %s4 = inlined_call_operand.vmem [shape: f32[2,1], index: 4, kind: input, shape index: {}]
  %s5 = inlined_call_operand.vmem [shape: f32[2], index: 5, kind: input, shape index: {}]
  %s6 = inlined_call_operand.hbm [shape: f32[2,128], index: 6, kind: output, shape index: {0}]
  %s7 = inlined_call_operand.hbm [shape: f32[2,128], index: 7, kind: output, shape index: {1}]
  %8 = xla_tuple %s6, %s7
  %s9 = sld [smem:[#allocation0]]
  $region58: #{tpu_custom_call.1} parent=0
    _
  %s11 = ssub.s32 1, %s9
  %s12 = scalar_select 0, %s11, %s9
  $region1: #{tpu_custom_call.1} parent=0
    #allocation2 [shape = 'u8[1024]{0}', space=smem, size = 0x400, scoped, tag = 'input window, operand 2, single buffered']
    #allocation3 [shape = 's32[1]{0}', space=sflag, size = 0x4, scoped, tag = 'scoped memory for tpu_custom_call.1']
    #allocation4 [shape = 's32[1]{0}', space=sflag, size = 0x4, scoped, tag = 'scoped memory for tpu_custom_call.1']
    #allocation5 [shape = 's32[1]{0}', space=sflag, size = 0x4, scoped, tag = 'scoped memory for tpu_custom_call.1']
    #allocation6 [shape = 'u8[512]{0}', space=smem, size = 0x200, scoped, tag = 'input window, operand 3, single buffered']
    #allocation7 [shape = 'u8[1024]{0}', space=smem, size = 0x400, scoped, tag = 'input window, operand 4, single buffered']
    #allocation8 [shape = 's32[1]{0}', space=sflag, size = 0x4, scoped, tag = 'scoped memory for tpu_custom_call.1']
    #allocation9 [shape = 'u8[512]{0}', space=smem, size = 0x200, scoped, tag = 'input window, operand 5, single buffered']
    #allocation10 [shape = 'u8[1024]{0}', space=vmem, size = 0x400, scoped, tag = 'output window, operand 0, single buffered']
    #allocation11 [shape = 'u8[1024]{0}', space=vmem, size = 0x400, scoped, tag = 'output window, operand 1, single buffered']
    #allocation12 [shape = 's32[1]{0}', space=sflag, size = 0x4, scoped, tag = 'scoped memory for tpu_custom_call.1']
    %13 = vsyncpa [#allocation4], 0
    %14 = vsyncpa [#allocation5], 0
    %15 = vsyncpa [#allocation8], 0
    %16 = vsyncpa [#allocation3], 0
    %17 = vsyncpa [#allocation12], 0
    // Predicated region
    $region2: #{tpu_custom_call.1} parent=1 // pred_check
      _
    $region3: #{tpu_custom_call.1} parent=1 // pred_check_branch
      %19 = sbr.rel (0) target = $region5
    $region4: #{tpu_custom_call.1} parent=1 // pred_region
      _
    $region5: #{tpu_custom_call.1} parent=1 // pred_fallthru
      _
    // Predicated region
    $region6: #{tpu_custom_call.1} parent=1 // pred_check
      _
    $region7: #{tpu_custom_call.1} parent=1 // pred_check_branch
      %21 = sbr.rel (0) target = $region9
    $region8: #{tpu_custom_call.1} parent=1 // pred_region
      _
    $region9: #{tpu_custom_call.1} parent=1 // pred_fallthru
      _
    // Predicated region
    $region10: #{tpu_custom_call.1} parent=1 // pred_check
      _
    $region11: #{tpu_custom_call.1} parent=1 // pred_check_branch
      %23 = sbr.rel (0) target = $region13
    $region12: #{tpu_custom_call.1} parent=1 // pred_region
      %25 = vsyncadd [#allocation4], 0
      %s27 = sshll.u32 %s2, 4
      %s28 = int_to_ptr.hbm [resolvable:$true] %s27
      %30 = dma.hbm_to_smem %s28, 32, [#allocation2], [#allocation4]
    $region13: #{tpu_custom_call.1} parent=1 // pred_fallthru
      _
    // Predicated region
    $region14: #{tpu_custom_call.1} parent=1 // pred_check
      _
    $region15: #{tpu_custom_call.1} parent=1 // pred_check_branch
      %32 = sbr.rel (0) target = $region17
    $region16: #{tpu_custom_call.1} parent=1 // pred_region
      %34 = vsyncadd [#allocation5], 0
      %s36 = sshll.u32 %s3, 4
      %s37 = int_to_ptr.vmem [resolvable:$true] %s36
      %39 = dma.vmem_to_smem %s37, 16, [#allocation6], [#allocation5]
    $region17: #{tpu_custom_call.1} parent=1 // pred_fallthru
      _
    // Predicated region
    $region18: #{tpu_custom_call.1} parent=1 // pred_check
      _
    $region19: #{tpu_custom_call.1} parent=1 // pred_check_branch
      %41 = sbr.rel (0) target = $region21
    $region20: #{tpu_custom_call.1} parent=1 // pred_region
      %43 = vsyncadd [#allocation8], 0
      %s45 = sshll.u32 %s4, 4
      %s46 = int_to_ptr.vmem [resolvable:$true] %s45
      %48 = dma.vmem_to_smem %s46, 32, [#allocation7], [#allocation8]
    $region21: #{tpu_custom_call.1} parent=1 // pred_fallthru
      _
    // Predicated region
    $region22: #{tpu_custom_call.1} parent=1 // pred_check
      _
    $region23: #{tpu_custom_call.1} parent=1 // pred_check_branch
      %50 = sbr.rel (0) target = $region25
    $region24: #{tpu_custom_call.1} parent=1 // pred_region
      %52 = vsyncadd [#allocation8], 0
      %s54 = sshll.u32 %s5, 4
      %s55 = int_to_ptr.vmem [resolvable:$true] %s54
      %57 = dma.vmem_to_smem %s55, 16, [#allocation9], [#allocation8]
    $region25: #{tpu_custom_call.1} parent=1 // pred_fallthru
      _
    // Predicated region
    $region26: #{tpu_custom_call.1} parent=1 // pred_check
      _
    $region27: #{tpu_custom_call.1} parent=1 // pred_check_branch
      %59 = sbr.rel (0) target = $region29
    $region28: #{tpu_custom_call.1} parent=1 // pred_region
      %61 = dma.done [#allocation4], 32
    $region29: #{tpu_custom_call.1} parent=1 // pred_fallthru
      _
    // Predicated region
    $region30: #{tpu_custom_call.1} parent=1 // pred_check
      _
    $region31: #{tpu_custom_call.1} parent=1 // pred_check_branch
      %63 = sbr.rel (0) target = $region33
    $region32: #{tpu_custom_call.1} parent=1 // pred_region
      %65 = dma.done [#allocation5], 16
    $region33: #{tpu_custom_call.1} parent=1 // pred_fallthru
      _
    // Predicated region
    $region34: #{tpu_custom_call.1} parent=1 // pred_check
      _
    $region35: #{tpu_custom_call.1} parent=1 // pred_check_branch
      %67 = sbr.rel (0) target = $region37
    $region36: #{tpu_custom_call.1} parent=1 // pred_region
      %69 = dma.done [#allocation8], 32
    $region37: #{tpu_custom_call.1} parent=1 // pred_fallthru
      _
    // Predicated region
    $region38: #{tpu_custom_call.1} parent=1 // pred_check
      _
    $region39: #{tpu_custom_call.1} parent=1 // pred_check_branch
      %71 = sbr.rel (0) target = $region41
    $region40: #{tpu_custom_call.1} parent=1 // pred_region
      %73 = dma.done [#allocation8], 16
    $region41: #{tpu_custom_call.1} parent=1 // pred_fallthru
      _
    %74 = sfence
    %v75 = vld [vmem:[%s0] sm:$0x1]
    %v76 = vld [vmem:[%s0 + $0x1] sm:$0x1]
    %v77 = vld [vmem:[%s1] sm:$0x1]
    %s78 = sld [smem:[#allocation2]]
    %v79 = vstv %s78
    %v80 = vmul.f32 %v79, %v75
    %s81 = sld [smem:[#allocation2 + $0x1]]
    %v82 = vstv %s81
    %v83 = vmul.f32 %v82, %v76
    %v84 = vadd.f32 %v80, %v83
    %s85 = sld [smem:[#allocation6]]
    %v86 = vstv %s85
    %v87 = vadd.f32 %v84, %v86
    %88 = vst [vmem:[#allocation10] sm:$0x1] %v87
    %s89 = sld [smem:[#allocation2 + $0x80]]
    %v90 = vstv %s89
    %v91 = vmul.f32 %v90, %v75
    %s92 = sld [smem:[#allocation2 + $0x81]]
    %v93 = vstv %s92
    %v94 = vmul.f32 %v93, %v76
    %v95 = vadd.f32 %v91, %v94
    %s96 = sld [smem:[#allocation6 + $0x1]]
    %v97 = vstv %s96
    %v98 = vadd.f32 %v95, %v97
    %99 = vst [vmem:[#allocation10 + $0x1] sm:$0x1] %v98
    %s100 = sld [smem:[#allocation7]]
    %v101 = vstv %s100
    %v102 = vmul.f32 %v101, %v77
    %s103 = sld [smem:[#allocation9]]
    %v104 = vstv %s103
    %v105 = vadd.f32 %v102, %v104
    %106 = vst [vmem:[#allocation11] sm:$0x1] %v105
    %s107 = sld [smem:[#allocation7 + $0x80]]
    %v108 = vstv %s107
    %v109 = vmul.f32 %v108, %v77
    %s110 = sld [smem:[#allocation9 + $0x1]]
    %v111 = vstv %s110
    %v112 = vadd.f32 %v109, %v111
    %113 = vst [vmem:[#allocation11 + $0x1] sm:$0x1] %v112
    // Predicated region
    $region42: #{tpu_custom_call.1} parent=1 // pred_check
      _
    $region43: #{tpu_custom_call.1} parent=1 // pred_check_branch
      %115 = sbr.rel (0) target = $region45
    $region44: #{tpu_custom_call.1} parent=1 // pred_region
      %117 = vsyncadd [#allocation3], 0
      %s119 = sshll.u32 [#allocation10], 4
      %s120 = int_to_ptr.vmem [resolvable:$true] %s119
      %s121 = sshll.u32 %s6, 4
      %s122 = int_to_ptr.hbm [resolvable:$true] %s121
      %124 = dma.vmem_to_hbm [thread:$0]  %s120, 32, %s122, [#allocation3]
    $region45: #{tpu_custom_call.1} parent=1 // pred_fallthru
      _
    // Predicated region
    $region46: #{tpu_custom_call.1} parent=1 // pred_check
      _
    $region47: #{tpu_custom_call.1} parent=1 // pred_check_branch
      %126 = sbr.rel (0) target = $region49
    $region48: #{tpu_custom_call.1} parent=1 // pred_region
      %128 = vsyncadd [#allocation12], 0
      %s130 = sshll.u32 [#allocation11], 4
      %s131 = int_to_ptr.vmem [resolvable:$true] %s130
      %s132 = sshll.u32 %s7, 4
      %s133 = int_to_ptr.hbm [resolvable:$true] %s132
      %135 = dma.vmem_to_hbm [thread:$0]  %s131, 32, %s133, [#allocation12]
    $region49: #{tpu_custom_call.1} parent=1 // pred_fallthru
      _
    // Predicated region
    $region50: #{tpu_custom_call.1} parent=1 // pred_check
      _
    $region51: #{tpu_custom_call.1} parent=1 // pred_check_branch
      %137 = sbr.rel (0) target = $region53
    $region52: #{tpu_custom_call.1} parent=1 // pred_region
      %139 = dma.done [#allocation3], 32
    $region53: #{tpu_custom_call.1} parent=1 // pred_fallthru
      _
    // Predicated region
    $region54: #{tpu_custom_call.1} parent=1 // pred_check
      _
    $region55: #{tpu_custom_call.1} parent=1 // pred_check_branch
      %141 = sbr.rel (0) target = $region57
    $region56: #{tpu_custom_call.1} parent=1 // pred_region
      %143 = dma.done [#allocation12], 32
    $region57: #{tpu_custom_call.1} parent=1 // pred_fallthru
      _
    %144 = vsyncpa [#allocation3], 1
    %145 = vsyncpa [#allocation12], 1
    %146 = vsyncpa [#allocation4], 1
    %147 = vsyncpa [#allocation5], 1
    %148 = vsyncpa [#allocation8], 1

</llo_original>
